<compile_context>
chip_gen: v7x
topology: tpu7x:2x2x1
jax: 0.10.0
libtpu: 0.0.40
codegen_flags: <defaults>
</compile_context>

<pallas_src>
import jax
import jax.numpy as jnp
from jax.experimental import pallas as pl
from jax.experimental.pallas import tpu as pltpu


def _make_fused_gnn_kernel(num_layers):
    """Build a kernel that applies `num_layers` GNN layers in one body.

    Kernel signature (all refs, whole arrays resident in VMEM):
        a_ref, h_ref, wt_0, b_0, wt_1, b_1, ..., out_ref
    wt_l : (F_in_l, F_out_l)  (weight already transposed)
    b_l  : (1, F_out_l)
    """

    def kernel(a_ref, h_ref, *rest):
        out_ref = rest[-1]
        param_refs = rest[:-1]

        a = a_ref[...]                      # (N, N) f32
        h = h_ref[...].astype(jnp.float32)  # (N, F_in) f32

        for l in range(num_layers):
            wt = param_refs[2 * l][...]         # (F_in, F_out)
            b = param_refs[2 * l + 1][...]      # (1, F_out)
            f_in, f_out = wt.shape

            if f_in <= f_out:
                # (A @ H) @ Wt — smaller intermediate (N, F_in)
                ah = jnp.dot(a, h, preferred_element_type=jnp.float32)
                z = jnp.dot(ah, wt, preferred_element_type=jnp.float32)
            else:
                # A @ (H @ Wt) — smaller intermediate (N, F_out)
                hw = jnp.dot(h, wt, preferred_element_type=jnp.float32)
                z = jnp.dot(a, hw, preferred_element_type=jnp.float32)

            h = jnp.maximum(z + b, 0.0)         # bias broadcast + ReLU, f32

        out_ref[...] = h.astype(out_ref.dtype)

    return kernel


def gnn_forward(x_n, a_tilde, params):
    """Fused GNN forward.

    params: list of (wt, b2) with wt shape (F_in, F_out) (pre-transposed)
            and b2 shape (1, F_out).
    """
    num_layers = len(params)
    n = x_n.shape[0]
    f_out_last = params[-1][0].shape[1]

    flat_params = []
    for wt, b2 in params:
        flat_params.append(wt)
        flat_params.append(b2)

    num_inputs = 2 + len(flat_params)
    kernel = _make_fused_gnn_kernel(num_layers)

    return pl.pallas_call(
        kernel,
        out_shape=jax.ShapeDtypeStruct((n, f_out_last), jnp.float32),
        in_specs=[pl.BlockSpec(memory_space=pltpu.MemorySpace.VMEM)] * num_inputs,
        out_specs=pl.BlockSpec(memory_space=pltpu.MemorySpace.VMEM),
    )(a_tilde, x_n, *flat_params)


def gnn_forward_ref(x_n, a_tilde, params):
    """Pure-JAX reference (same pre-transposed param layout)."""
    h = x_n
    for wt, b2 in params:
        h = a_tilde @ h
        h = jax.nn.relu(h @ wt + b2)
    return h


def init_params(key, input_dim, hidden_dims):
    """nn.Linear-style init, stored pre-transposed: (F_in, F_out) + (1, F_out)."""
    params = []
    current_dim = input_dim
    for dim in hidden_dims:
        key, kw, kb = jax.random.split(key, 3)
        bound = 1.0 / jnp.sqrt(current_dim)
        w = jax.random.uniform(kw, (dim, current_dim), jnp.float32, -bound, bound)
        b = jax.random.uniform(kb, (dim,), jnp.float32, -bound, bound)
        params.append((w.T, b.reshape(1, dim)))   # transpose/reshape ONCE here
        current_dim = dim
    return params


if __name__ == "__main__":
    key = jax.random.PRNGKey(0)
    k_x, k_a, k_p = jax.random.split(key, 3)

    N = 16                 # number of graph nodes
    input_dim = 32
    hidden_dims = [64, 32]

    x_n = jax.random.normal(k_x, (N, input_dim), jnp.float32)
    # Symmetric normalized-adjacency-like matrix (any dense (N, N) works).
    a_raw = jax.random.uniform(k_a, (N, N), jnp.float32)
    a_tilde = (a_raw + a_raw.T) * 0.5 / N

    params = init_params(k_p, input_dim, hidden_dims)

    fwd = jax.jit(gnn_forward)
    out = fwd(x_n, a_tilde, params)
    out = jax.block_until_ready(out)

    ref = gnn_forward_ref(x_n, a_tilde, params)
    assert out.shape == (N, hidden_dims[-1])
    assert jnp.allclose(out, ref, atol=1e-4, rtol=1e-4), "mismatch vs reference"

    print("KERNEL_OK")
</pallas_src>

<mosaic_0001>
module attributes {stable_mosaic.version = 11 : i64} {
  func.func @kernel(%arg0: memref<16x16xf32, #tpu.memory_space<vmem>>, %arg1: memref<16x32xf32, #tpu.memory_space<vmem>>, %arg2: memref<32x64xf32, #tpu.memory_space<vmem>>, %arg3: memref<1x64xf32, #tpu.memory_space<vmem>>, %arg4: memref<64x32xf32, #tpu.memory_space<vmem>>, %arg5: memref<1x32xf32, #tpu.memory_space<vmem>>, %arg6: memref<16x32xf32, #tpu.memory_space<vmem>>) attributes {dimension_semantics = [], scalar_prefetch = 0 : i64, scratch_operands = 0 : i64, tpu.core_type = #tpu.core_type<tc>} {
    %c0 = arith.constant 0 : index
    %c0_0 = arith.constant 0 : index
    %0 = vector.load %arg0[%c0, %c0_0] : memref<16x16xf32, #tpu.memory_space<vmem>>, vector<16x16xf32>
    %c0_1 = arith.constant 0 : index
    %c0_2 = arith.constant 0 : index
    %1 = vector.load %arg1[%c0_1, %c0_2] : memref<16x32xf32, #tpu.memory_space<vmem>>, vector<16x32xf32>
    %c0_3 = arith.constant 0 : index
    %c0_4 = arith.constant 0 : index
    %2 = vector.load %arg2[%c0_3, %c0_4] : memref<32x64xf32, #tpu.memory_space<vmem>>, vector<32x64xf32>
    %c0_5 = arith.constant 0 : index
    %c0_6 = arith.constant 0 : index
    %3 = vector.load %arg3[%c0_5, %c0_6] : memref<1x64xf32, #tpu.memory_space<vmem>>, vector<1x64xf32>
    %cst = arith.constant dense<0.000000e+00> : vector<16x32xf32>
    %4 = tpu.matmul %0, %1, %cst {dimension_numbers = #tpu.dot_dimension_numbers<[1], [0], [0], [1], [0, 0, 1, 1], [], []>} : vector<16x16xf32>, vector<16x32xf32>, vector<16x32xf32> -> vector<16x32xf32>
    %cst_7 = arith.constant dense<0.000000e+00> : vector<16x64xf32>
    %5 = tpu.matmul %4, %2, %cst_7 {dimension_numbers = #tpu.dot_dimension_numbers<[1], [0], [0], [1], [0, 0, 1, 1], [], []>} : vector<16x32xf32>, vector<32x64xf32>, vector<16x64xf32> -> vector<16x64xf32>
    %6 = vector.broadcast %3 : vector<1x64xf32> to vector<16x64xf32>
    %7 = arith.addf %5, %6 : vector<16x64xf32>
    %cst_8 = arith.constant 0.000000e+00 : f32
    %8 = vector.broadcast %cst_8 : f32 to vector<16x64xf32>
    %9 = arith.maximumf %7, %8 : vector<16x64xf32>
    %c0_9 = arith.constant 0 : index
    %c0_10 = arith.constant 0 : index
    %10 = vector.load %arg4[%c0_9, %c0_10] : memref<64x32xf32, #tpu.memory_space<vmem>>, vector<64x32xf32>
    %c0_11 = arith.constant 0 : index
    %c0_12 = arith.constant 0 : index
    %11 = vector.load %arg5[%c0_11, %c0_12] : memref<1x32xf32, #tpu.memory_space<vmem>>, vector<1x32xf32>
    %cst_13 = arith.constant dense<0.000000e+00> : vector<16x32xf32>
    %12 = tpu.matmul %9, %10, %cst_13 {dimension_numbers = #tpu.dot_dimension_numbers<[1], [0], [0], [1], [0, 0, 1, 1], [], []>} : vector<16x64xf32>, vector<64x32xf32>, vector<16x32xf32> -> vector<16x32xf32>
    %cst_14 = arith.constant dense<0.000000e+00> : vector<16x32xf32>
    %13 = tpu.matmul %0, %12, %cst_14 {dimension_numbers = #tpu.dot_dimension_numbers<[1], [0], [0], [1], [0, 0, 1, 1], [], []>} : vector<16x16xf32>, vector<16x32xf32>, vector<16x32xf32> -> vector<16x32xf32>
    %14 = vector.broadcast %11 : vector<1x32xf32> to vector<16x32xf32>
    %15 = arith.addf %13, %14 : vector<16x32xf32>
    %cst_15 = arith.constant 0.000000e+00 : f32
    %16 = vector.broadcast %cst_15 : f32 to vector<16x32xf32>
    %17 = arith.maximumf %15, %16 : vector<16x32xf32>
    %c0_16 = arith.constant 0 : index
    %c0_17 = arith.constant 0 : index
    %18 = vector.load %arg6[%c0_16, %c0_17] : memref<16x32xf32, #tpu.memory_space<vmem>>, vector<16x32xf32>
    tpu.vector_store %arg6[%c0_16, %c0_17], %17 {strides = array<i32>} : memref<16x32xf32, #tpu.memory_space<vmem>>, vector<16x32xf32>,
    return
  }
}

</mosaic_0001>

<llo_original>
// kernel: gnn_forward.1
$region0: #{gnn_forward.1}
  #allocation0 [shape = 'u32[]', space=smem, size = 0x4, offset = 0x4, fixed_abs, tag = 'smem constant byte address 0x4 - core index']
  #allocation1 [shape = 'u32[144,128]{1,0:T(1,128)}', space=vmem, size = 0x12000, scoped, tag = 'internal scratch']
  %s0 = inlined_call_operand.vmem [shape: f32[16,16], index: 0, kind: input, shape index: {}]
  %s1 = inlined_call_operand.vmem [shape: f32[16,32], index: 1, kind: input, shape index: {}]
  %s2 = inlined_call_operand.vmem [shape: f32[32,64], index: 2, kind: input, shape index: {}]
  %s3 = inlined_call_operand.vmem [shape: f32[1,64], index: 3, kind: input, shape index: {}]
  %s4 = inlined_call_operand.vmem [shape: f32[64,32], index: 4, kind: input, shape index: {}]
  %s5 = inlined_call_operand.vmem [shape: f32[1,32], index: 5, kind: input, shape index: {}]
  %s6 = inlined_call_operand.hbm [shape: f32[16,32], index: 6, kind: output, shape index: {}]
  %s7 = sld [smem:[#allocation0]]
  $region34: #{gnn_forward.1} parent=0
    _
  %s9 = ssub.s32 1, %s7
  %s10 = scalar_select 0, %s9, %s7
  $region1: #{gnn_forward.1} parent=0
    #allocation2 [shape = 'u8[8192]{0}', space=vmem, size = 0x2000, scoped, tag = 'output window, operand 0, single buffered']
    #allocation3 [shape = 's32[1]{0}', space=sflag, size = 0x4, scoped, tag = 'scoped memory for gnn_forward.1']
    %11 = vsyncpa [#allocation3], 0
    // Predicated region
    $region2: #{gnn_forward.1} parent=1 // pred_check
      _
    $region3: #{gnn_forward.1} parent=1 // pred_check_branch
      %13 = sbr.rel (0) target = $region5
    $region4: #{gnn_forward.1} parent=1 // pred_region
      _
    $region5: #{gnn_forward.1} parent=1 // pred_fallthru
      _
    // Predicated region
    $region6: #{gnn_forward.1} parent=1 // pred_check
      _
    $region7: #{gnn_forward.1} parent=1 // pred_check_branch
      %15 = sbr.rel (0) target = $region9
    $region8: #{gnn_forward.1} parent=1 // pred_region
      _
    $region9: #{gnn_forward.1} parent=1 // pred_fallthru
      _
    // Predicated region
    $region10: #{gnn_forward.1} parent=1 // pred_check
      _
    $region11: #{gnn_forward.1} parent=1 // pred_check_branch
      %17 = sbr.rel (0) target = $region13
    $region12: #{gnn_forward.1} parent=1 // pred_region
      _
    $region13: #{gnn_forward.1} parent=1 // pred_fallthru
      _
    // Predicated region
    $region14: #{gnn_forward.1} parent=1 // pred_check
      _
    $region15: #{gnn_forward.1} parent=1 // pred_check_branch
      %19 = sbr.rel (0) target = $region17
    $region16: #{gnn_forward.1} parent=1 // pred_region
      _
    $region17: #{gnn_forward.1} parent=1 // pred_fallthru
      _
    // Predicated region
    $region18: #{gnn_forward.1} parent=1 // pred_check
      _
    $region19: #{gnn_forward.1} parent=1 // pred_check_branch
      %21 = sbr.rel (0) target = $region21
    $region20: #{gnn_forward.1} parent=1 // pred_region
      _
    $region21: #{gnn_forward.1} parent=1 // pred_fallthru
      _
    // Predicated region
    $region22: #{gnn_forward.1} parent=1 // pred_check
      _
    $region23: #{gnn_forward.1} parent=1 // pred_check_branch
      %23 = sbr.rel (0) target = $region25
    $region24: #{gnn_forward.1} parent=1 // pred_region
      _
    $region25: #{gnn_forward.1} parent=1 // pred_fallthru
      _
    %v24 = vld [vmem:[%s0] sm:$0xff]
    %v25 = vld [vmem:[%s0 + $0x8] sm:$0xff]
    %v26 = vld [vmem:[%s1] sm:$0xff]
    %v27 = vld [vmem:[%s1 + $0x8] sm:$0xff]
    %v28 = vld [vmem:[%s2] sm:$0xff]
    %v29 = vld [vmem:[%s2 + $0x8] sm:$0xff]
    %v30 = vld [vmem:[%s2 + $0x10] sm:$0xff]
    %v31 = vld [vmem:[%s2 + $0x18] sm:$0xff]
    %v32 = vld [vmem:[%s3] sm:$0x1]
    %vm33 = vcmask 130048
    %v35 = vsel %vm33, %v24, 0
    %v38 = vsel %vm33, %v25, 0
    %40 = vmatprep.subr.mxu0 0.0
    %41 = vmatpush1.msra.mxu0 %v26
    %42 = vmatprep.subr.mxu0 0.0
    %43 = vmatpush1.msra.mxu0 %v27
    %44 = vmatprep.subr.mxu0 0.0
    %45 = vmatpush1.msra.mxu0 0.0
    %46 = vmatprep.subr.mxu0 0.0
    %47 = vmatpush1.msra.mxu0 0.0
    %48 = vmatprep.subr.mxu0 0.0
    %49 = vmatpush1.msra.mxu0 0.0
    %50 = vmatprep.subr.mxu0 0.0
    %51 = vmatpush1.msra.mxu0 0.0
    %52 = vmatprep.subr.mxu0 0.0
    %53 = vmatpush1.msra.mxu0 0.0
    %54 = vmatprep.subr.mxu0 0.0
    %55 = vmatpush1.msra.mxu0 0.0
    %56 = vmatprep.subr.mxu0 0.0
    %57 = vmatpush1.msra.mxu0 0.0
    %58 = vmatprep.subr.mxu0 0.0
    %59 = vmatpush1.msra.mxu0 0.0
    %60 = vmatprep.subr.mxu0 0.0
    %61 = vmatpush1.msra.mxu0 0.0
    %62 = vmatprep.subr.mxu0 0.0
    %63 = vmatpush1.msra.mxu0 0.0
    %64 = vmatprep.subr.mxu0 0.0
    %65 = vmatpush1.msra.mxu0 0.0
    %66 = vmatprep.subr.mxu0 0.0
    %67 = vmatpush1.msra.mxu0 0.0
    %68 = vmatprep.subr.mxu0 0.0
    %69 = vmatpush1.msra.mxu0 0.0
    %70 = vmatprep.subr.mxu0 0.0
    %71 = vmatpush1.msra.mxu0 0.0
    %72 = vmatprep.subr.mxu0 0.0
    %73 = vmatpush1.msra.mxu0 0.0
    %74 = vmatprep.subr.mxu0 0.0
    %75 = vmatpush1.msra.mxu0 0.0
    %76 = vmatprep.subr.mxu0 0.0
    %77 = vmatpush1.msra.mxu0 0.0
    %78 = vmatprep.subr.mxu0 0.0
    %79 = vmatpush1.msra.mxu0 0.0
    %80 = vmatprep.subr.mxu0 0.0
    %81 = vmatpush1.msra.mxu0 0.0
    %82 = vmatprep.subr.mxu0 0.0
    %83 = vmatpush1.msra.mxu0 0.0
    %84 = vmatprep.subr.mxu0 0.0
    %85 = vmatpush1.msra.mxu0 0.0
    %86 = vmatprep.subr.mxu0 0.0
    %87 = vmatpush1.msra.mxu0 0.0
    %88 = vmatprep.subr.mxu0 0.0
    %89 = vmatpush1.msra.mxu0 0.0
    %90 = vmatprep.subr.mxu0 0.0
    %91 = vmatpush1.msra.mxu0 0.0
    %92 = vmatprep.subr.mxu0 0.0
    %93 = vmatpush1.msra.mxu0 0.0
    %94 = vmatprep.subr.mxu0 0.0
    %95 = vmatpush1.msra.mxu0 0.0
    %96 = vmatprep.subr.mxu0 0.0
    %97 = vmatpush1.msra.mxu0 0.0
    %98 = vmatprep.subr.mxu0 0.0
    %99 = vmatpush1.msra.mxu0 0.0
    %100 = vmatprep.subr.mxu0 0.0
    %101 = vmatpush1.msra.mxu0 0.0
    %102 = vmatprep.subr.mxu0 0.0
    %103 = vmatpush1.msra.mxu0 0.0
    %104 = vmatprep.mubr.f32.mxu0 0.0
    %105 = vmatmul.mubr.f32.gmra.mrb[0].mxu0 %v35
    %v106 = vpop.f32.mrb[0].mxu0
    %v107 = vadd.f32 0.0, %v106
    %v108 = vpop.f32.mrb[0].mxu0
    %109 = vmatprep.mubr.f32.mxu0 0.0
    %110 = vmatmul.mubr.f32.gmra.mrb[0].mxu0 %v38
    %v111 = vpop.f32.mrb[0].mxu0
    %v112 = vadd.f32 0.0, %v111
    %v113 = vpop.f32.mrb[0].mxu0
    %114 = vdwg.mxu0
    %v116 = vlaneseq
    %v117 = vshrl.u32 %v116, 7
    %v118 = vsub.s32 0, %v117
    %v119 = vrot.slane %v32, %v118
    %vm121 = vcmask 261120
    %v123 = vsel %vm121, %v107, 0
    %v126 = vsel %vm121, %v112, 0
    %128 = vmatprep.subr.mxu0 0.0
    %129 = vmatpush1.msra.mxu0 %v28
    %130 = vmatprep.subr.mxu0 0.0
    %131 = vmatpush1.msra.mxu0 %v29
    %132 = vmatprep.subr.mxu0 0.0
    %133 = vmatpush1.msra.mxu0 %v30
    %134 = vmatprep.subr.mxu0 0.0
    %135 = vmatpush1.msra.mxu0 %v31
    %136 = vmatprep.subr.mxu0 0.0
    %137 = vmatpush1.msra.mxu0 0.0
    %138 = vmatprep.subr.mxu0 0.0
    %139 = vmatpush1.msra.mxu0 0.0
    %140 = vmatprep.subr.mxu0 0.0
    %141 = vmatpush1.msra.mxu0 0.0
    %142 = vmatprep.subr.mxu0 0.0
    %143 = vmatpush1.msra.mxu0 0.0
    %144 = vmatprep.subr.mxu0 0.0
    %145 = vmatpush1.msra.mxu0 0.0
    %146 = vmatprep.subr.mxu0 0.0
    %147 = vmatpush1.msra.mxu0 0.0
    %148 = vmatprep.subr.mxu0 0.0
    %149 = vmatpush1.msra.mxu0 0.0
    %150 = vmatprep.subr.mxu0 0.0
    %151 = vmatpush1.msra.mxu0 0.0
    %152 = vmatprep.subr.mxu0 0.0
    %153 = vmatpush1.msra.mxu0 0.0
    %154 = vmatprep.subr.mxu0 0.0
    %155 = vmatpush1.msra.mxu0 0.0
    %156 = vmatprep.subr.mxu0 0.0
    %157 = vmatpush1.msra.mxu0 0.0
    %158 = vmatprep.subr.mxu0 0.0
    %159 = vmatpush1.msra.mxu0 0.0
    %160 = vmatprep.subr.mxu0 0.0
    %161 = vmatpush1.msra.mxu0 0.0
    %162 = vmatprep.subr.mxu0 0.0
    %163 = vmatpush1.msra.mxu0 0.0
    %164 = vmatprep.subr.mxu0 0.0
    %165 = vmatpush1.msra.mxu0 0.0
    %166 = vmatprep.subr.mxu0 0.0
    %167 = vmatpush1.msra.mxu0 0.0
    %168 = vmatprep.subr.mxu0 0.0
    %169 = vmatpush1.msra.mxu0 0.0
    %170 = vmatprep.subr.mxu0 0.0
    %171 = vmatpush1.msra.mxu0 0.0
    %172 = vmatprep.subr.mxu0 0.0
    %173 = vmatpush1.msra.mxu0 0.0
    %174 = vmatprep.subr.mxu0 0.0
    %175 = vmatpush1.msra.mxu0 0.0
    %176 = vmatprep.subr.mxu0 0.0
    %177 = vmatpush1.msra.mxu0 0.0
    %178 = vmatprep.subr.mxu0 0.0
    %179 = vmatpush1.msra.mxu0 0.0
    %180 = vmatprep.subr.mxu0 0.0
    %181 = vmatpush1.msra.mxu0 0.0
    %182 = vmatprep.subr.mxu0 0.0
    %183 = vmatpush1.msra.mxu0 0.0
    %184 = vmatprep.subr.mxu0 0.0
    %185 = vmatpush1.msra.mxu0 0.0
    %186 = vmatprep.subr.mxu0 0.0
    %187 = vmatpush1.msra.mxu0 0.0
    %188 = vmatprep.subr.mxu0 0.0
    %189 = vmatpush1.msra.mxu0 0.0
    %190 = vmatprep.subr.mxu0 0.0
    %191 = vmatpush1.msra.mxu0 0.0
    %192 = vmatprep.mubr.f32.mxu0 0.0
    %193 = vmatmul.mubr.f32.gmra.mrb[0].mxu0 %v123
    %v194 = vpop.f32.mrb[0].mxu0
    %v195 = vadd.f32 %v119, %v194
    %v196 = vpop.f32.mrb[0].mxu0
    %197 = vmatprep.mubr.f32.mxu0 0.0
    %198 = vmatmul.mubr.f32.gmra.mrb[0].mxu0 %v126
    %v199 = vpop.f32.mrb[0].mxu0
    %v200 = vadd.f32 %v119, %v199
    %v201 = vpop.f32.mrb[0].mxu0
    %202 = vdwg.mxu0
    %v203 = vmax.f32 %v195, 0.0
    %v204 = vmax.f32 %v200, 0.0
    %v205 = vld [vmem:[%s4] sm:$0xff]
    %v206 = vld [vmem:[%s4 + $0x8] sm:$0xff]
    %v207 = vld [vmem:[%s4 + $0x10] sm:$0xff]
    %v208 = vld [vmem:[%s4 + $0x18] sm:$0xff]
    %v209 = vld [vmem:[%s4 + $0x20] sm:$0xff]
    %v210 = vld [vmem:[%s4 + $0x28] sm:$0xff]
    %v211 = vld [vmem:[%s4 + $0x30] sm:$0xff]
    %v212 = vld [vmem:[%s4 + $0x38] sm:$0xff]
    %v213 = vld [vmem:[%s5] sm:$0x1]
    %vm214 = vcmask 523264
    %v216 = vsel %vm214, %v203, 0
    %v219 = vsel %vm214, %v204, 0
    %221 = vmatprep.subr.mxu0 0.0
    %222 = vmatpush1.msra.mxu0 %v205
    %223 = vmatprep.subr.mxu0 0.0
    %224 = vmatpush1.msra.mxu0 %v206
    %225 = vmatprep.subr.mxu0 0.0
    %226 = vmatpush1.msra.mxu0 %v207
    %227 = vmatprep.subr.mxu0 0.0
    %228 = vmatpush1.msra.mxu0 %v208
    %229 = vmatprep.subr.mxu0 0.0
    %230 = vmatpush1.msra.mxu0 %v209
    %231 = vmatprep.subr.mxu0 0.0
    %232 = vmatpush1.msra.mxu0 %v210
    %233 = vmatprep.subr.mxu0 0.0
    %234 = vmatpush1.msra.mxu0 %v211
    %235 = vmatprep.subr.mxu0 0.0
    %236 = vmatpush1.msra.mxu0 %v212
    %237 = vmatprep.subr.mxu0 0.0
    %238 = vmatpush1.msra.mxu0 0.0
    %239 = vmatprep.subr.mxu0 0.0
    %240 = vmatpush1.msra.mxu0 0.0
    %241 = vmatprep.subr.mxu0 0.0
    %242 = vmatpush1.msra.mxu0 0.0
    %243 = vmatprep.subr.mxu0 0.0
    %244 = vmatpush1.msra.mxu0 0.0
    %245 = vmatprep.subr.mxu0 0.0
    %246 = vmatpush1.msra.mxu0 0.0
    %247 = vmatprep.subr.mxu0 0.0
    %248 = vmatpush1.msra.mxu0 0.0
    %249 = vmatprep.subr.mxu0 0.0
    %250 = vmatpush1.msra.mxu0 0.0
    %251 = vmatprep.subr.mxu0 0.0
    %252 = vmatpush1.msra.mxu0 0.0
    %253 = vmatprep.subr.mxu0 0.0
    %254 = vmatpush1.msra.mxu0 0.0
    %255 = vmatprep.subr.mxu0 0.0
    %256 = vmatpush1.msra.mxu0 0.0
    %257 = vmatprep.subr.mxu0 0.0
    %258 = vmatpush1.msra.mxu0 0.0
    %259 = vmatprep.subr.mxu0 0.0
    %260 = vmatpush1.msra.mxu0 0.0
    %261 = vmatprep.subr.mxu0 0.0
    %262 = vmatpush1.msra.mxu0 0.0
    %263 = vmatprep.subr.mxu0 0.0
    %264 = vmatpush1.msra.mxu0 0.0
    %265 = vmatprep.subr.mxu0 0.0
    %266 = vmatpush1.msra.mxu0 0.0
    %267 = vmatprep.subr.mxu0 0.0
    %268 = vmatpush1.msra.mxu0 0.0
    %269 = vmatprep.subr.mxu0 0.0
    %270 = vmatpush1.msra.mxu0 0.0
    %271 = vmatprep.subr.mxu0 0.0
    %272 = vmatpush1.msra.mxu0 0.0
    %273 = vmatprep.subr.mxu0 0.0
    %274 = vmatpush1.msra.mxu0 0.0
    %275 = vmatprep.subr.mxu0 0.0
    %276 = vmatpush1.msra.mxu0 0.0
    %277 = vmatprep.subr.mxu0 0.0
    %278 = vmatpush1.msra.mxu0 0.0
    %279 = vmatprep.subr.mxu0 0.0
    %280 = vmatpush1.msra.mxu0 0.0
    %281 = vmatprep.subr.mxu0 0.0
    %282 = vmatpush1.msra.mxu0 0.0
    %283 = vmatprep.subr.mxu0 0.0
    %284 = vmatpush1.msra.mxu0 0.0
    %285 = vmatprep.mubr.f32.mxu0 0.0
    %286 = vmatmul.mubr.f32.gmra.mrb[0].mxu0 %v216
    %v287 = vpop.f32.mrb[0].mxu0
    %v288 = vadd.f32 0.0, %v287
    %v289 = vpop.f32.mrb[0].mxu0
    %290 = vmatprep.mubr.f32.mxu0 0.0
    %291 = vmatmul.mubr.f32.gmra.mrb[0].mxu0 %v219
    %v292 = vpop.f32.mrb[0].mxu0
    %v293 = vadd.f32 0.0, %v292
    %v294 = vpop.f32.mrb[0].mxu0
    %295 = vdwg.mxu0
    %v297 = vlaneseq
    %v298 = vshrl.u32 %v297, 7
    %v299 = vsub.s32 0, %v298
    %v300 = vrot.slane %v213, %v299
    %302 = vmatprep.subr.mxu0 0.0
    %303 = vmatpush1.msra.mxu0 %v288
    %304 = vmatprep.subr.mxu0 0.0
    %305 = vmatpush1.msra.mxu0 %v293
    %306 = vmatprep.subr.mxu0 0.0
    %307 = vmatpush1.msra.mxu0 0.0
    %308 = vmatprep.subr.mxu0 0.0
    %309 = vmatpush1.msra.mxu0 0.0
    %310 = vmatprep.subr.mxu0 0.0
    %311 = vmatpush1.msra.mxu0 0.0
    %312 = vmatprep.subr.mxu0 0.0
    %313 = vmatpush1.msra.mxu0 0.0
    %314 = vmatprep.subr.mxu0 0.0
    %315 = vmatpush1.msra.mxu0 0.0
    %316 = vmatprep.subr.mxu0 0.0
    %317 = vmatpush1.msra.mxu0 0.0
    %318 = vmatprep.subr.mxu0 0.0
    %319 = vmatpush1.msra.mxu0 0.0
    %320 = vmatprep.subr.mxu0 0.0
    %321 = vmatpush1.msra.mxu0 0.0
    %322 = vmatprep.subr.mxu0 0.0
    %323 = vmatpush1.msra.mxu0 0.0
    %324 = vmatprep.subr.mxu0 0.0
    %325 = vmatpush1.msra.mxu0 0.0
    %326 = vmatprep.subr.mxu0 0.0
    %327 = vmatpush1.msra.mxu0 0.0
    %328 = vmatprep.subr.mxu0 0.0
    %329 = vmatpush1.msra.mxu0 0.0
    %330 = vmatprep.subr.mxu0 0.0
    %331 = vmatpush1.msra.mxu0 0.0
    %332 = vmatprep.subr.mxu0 0.0
    %333 = vmatpush1.msra.mxu0 0.0
    %334 = vmatprep.subr.mxu0 0.0
    %335 = vmatpush1.msra.mxu0 0.0
    %336 = vmatprep.subr.mxu0 0.0
    %337 = vmatpush1.msra.mxu0 0.0
    %338 = vmatprep.subr.mxu0 0.0
    %339 = vmatpush1.msra.mxu0 0.0
    %340 = vmatprep.subr.mxu0 0.0
    %341 = vmatpush1.msra.mxu0 0.0
    %342 = vmatprep.subr.mxu0 0.0
    %343 = vmatpush1.msra.mxu0 0.0
    %344 = vmatprep.subr.mxu0 0.0
    %345 = vmatpush1.msra.mxu0 0.0
    %346 = vmatprep.subr.mxu0 0.0
    %347 = vmatpush1.msra.mxu0 0.0
    %348 = vmatprep.subr.mxu0 0.0
    %349 = vmatpush1.msra.mxu0 0.0
    %350 = vmatprep.subr.mxu0 0.0
    %351 = vmatpush1.msra.mxu0 0.0
    %352 = vmatprep.subr.mxu0 0.0
    %353 = vmatpush1.msra.mxu0 0.0
    %354 = vmatprep.subr.mxu0 0.0
    %355 = vmatpush1.msra.mxu0 0.0
    %356 = vmatprep.subr.mxu0 0.0
    %357 = vmatpush1.msra.mxu0 0.0
    %358 = vmatprep.subr.mxu0 0.0
    %359 = vmatpush1.msra.mxu0 0.0
    %360 = vmatprep.subr.mxu0 0.0
    %361 = vmatpush1.msra.mxu0 0.0
    %362 = vmatprep.subr.mxu0 0.0
    %363 = vmatpush1.msra.mxu0 0.0
    %364 = vmatprep.subr.mxu0 0.0
    %365 = vmatpush1.msra.mxu0 0.0
    %366 = vmatprep.mubr.f32.mxu0 0.0
    %367 = vmatmul.mubr.f32.gmra.mrb[0].mxu0 %v35
    %v368 = vpop.f32.mrb[0].mxu0
    %v369 = vadd.f32 %v300, %v368
    %v370 = vpop.f32.mrb[0].mxu0
    %371 = vmatprep.mubr.f32.mxu0 0.0
    %372 = vmatmul.mubr.f32.gmra.mrb[0].mxu0 %v38
    %v373 = vpop.f32.mrb[0].mxu0
    %v374 = vadd.f32 %v300, %v373
    %v375 = vpop.f32.mrb[0].mxu0
    %376 = vdwg.mxu0
    %v377 = vmax.f32 %v369, 0.0
    %v378 = vmax.f32 %v374, 0.0
    %379 = vst.msk [vmem:[#allocation2] sm:$0xff] %vm121, %v377
    %380 = vst.msk [vmem:[#allocation2 + $0x8] sm:$0xff] %vm121, %v378
    // Predicated region
    $region26: #{gnn_forward.1} parent=1 // pred_check
      _
    $region27: #{gnn_forward.1} parent=1 // pred_check_branch
      %382 = sbr.rel (0) target = $region29
    $region28: #{gnn_forward.1} parent=1 // pred_region
      %s384 = ssub.s32 256, 256
      %385 = vsyncadd [#allocation3], %s384
      %s386 = sshll.u32 [#allocation2], 4
      %s387 = int_to_ptr.vmem [resolvable:$true] %s386
      %392 = dma.vmem_to_hbm [thread:$0]  %s387, 256, %s6, [#allocation3], 128, 128, 8
    $region29: #{gnn_forward.1} parent=1 // pred_fallthru
      _
    // Predicated region
    $region30: #{gnn_forward.1} parent=1 // pred_check
      _
    $region31: #{gnn_forward.1} parent=1 // pred_check_branch
      %394 = sbr.rel (0) target = $region33
    $region32: #{gnn_forward.1} parent=1 // pred_region
      %395 = dma.done [#allocation3], 256
    $region33: #{gnn_forward.1} parent=1 // pred_fallthru
      _
    %396 = vsyncpa [#allocation3], 1

</llo_original>
